<compile_context>
chip_gen: v7x
topology: tpu7x:2x2x1
jax: 0.10.0
libtpu: 0.0.40
codegen_flags: <defaults>
</compile_context>

<pallas_src>
import jax
import jax.numpy as jnp
from jax.experimental import pallas as pl
from jax.experimental.pallas import tpu as pltpu

_LANE = 128


def _round_up(x, m):
    return (x + m - 1) // m * m


def _linear_kernel(x_ref, w_ref, b_ref, o_ref):
    # x_ref: (tile_m, K_pad), w_ref: (K_pad, N_pad), b_ref: (1, N_pad) f32,
    # o_ref: (tile_m, N_pad).  Minimal epilogue: bias add + cast.
    acc = jnp.dot(x_ref[...], w_ref[...], preferred_element_type=jnp.float32)
    o_ref[...] = (acc + b_ref[...]).astype(o_ref.dtype)


def _choose_tile_m(M, K_pad, N_pad, x_bytes, out_bytes, row_align,
                   vmem_budget_bytes, max_tile_m):
    # Double-buffered x and out tiles scale with tile_m; W^T and bias are
    # grid-constant but conservatively counted as double-buffered too.
    per_row = 2 * K_pad * x_bytes + 2 * N_pad * out_bytes
    fixed = 2 * K_pad * N_pad * x_bytes + 2 * N_pad * 4
    avail = max(vmem_budget_bytes - fixed, per_row * row_align)
    tile = (avail // per_row) // row_align * row_align
    tile = int(max(row_align, min(tile, max_tile_m)))
    # Keep >= 2 grid steps when M allows so both v7x TensorCores get work.
    half = _round_up((M + 1) // 2, row_align)
    return min(tile, max(row_align, half))


def final_layer_forward(x, weight, bias, *, compute_dtype=jnp.bfloat16,
                        max_tile_m=1024, vmem_budget_bytes=24 * 1024 * 1024):
    """y = x @ weight.T + bias over the last axis of x (nn.Linear semantics).

    x:      (..., latent_dim)
    weight: (out_dim, latent_dim)   (PyTorch nn.Linear layout)
    bias:   (out_dim,)
    """
    out_dtype = x.dtype
    latent_dim = x.shape[-1]
    out_dim = weight.shape[0]
    lead_shape = x.shape[:-1]

    x2d = x.reshape(-1, latent_dim)          # (M, K)
    M, K = x2d.shape

    # Lane-dense padding: K and N up to multiples of 128.
    K_pad = _round_up(max(K, _LANE), _LANE)
    N_pad = _round_up(max(out_dim, _LANE), _LANE)

    x_bytes = jnp.dtype(compute_dtype).itemsize
    out_bytes = jnp.dtype(out_dtype).itemsize
    # Sublane packing: 8 rows for 4-byte dtypes, 16 for 2-byte, 32 for 1-byte.
    row_align = max(8, 32 // x_bytes, 32 // out_bytes)

    tile_m = _choose_tile_m(M, K_pad, N_pad, x_bytes, out_bytes, row_align,
                            vmem_budget_bytes, max_tile_m)
    M_pad = _round_up(M, tile_m)

    xp = jnp.pad(x2d.astype(compute_dtype), ((0, M_pad - M), (0, K_pad - K)))
    wp = jnp.pad(weight.T.astype(compute_dtype),
                 ((0, K_pad - K), (0, N_pad - out_dim)))
    bp = jnp.pad(bias.astype(jnp.float32), (0, N_pad - out_dim)).reshape(1, N_pad)

    grid = (M_pad // tile_m,)

    out = pl.pallas_call(
        _linear_kernel,
        out_shape=jax.ShapeDtypeStruct((M_pad, N_pad), out_dtype),
        grid_spec=pltpu.PrefetchScalarGridSpec(
            num_scalar_prefetch=0,
            grid=grid,
            in_specs=[
                pl.BlockSpec((tile_m, K_pad), lambda i: (i, 0)),   # x row tile
                pl.BlockSpec((K_pad, N_pad), lambda i: (0, 0)),    # full W^T (hoisted)
                pl.BlockSpec((1, N_pad), lambda i: (0, 0)),        # full bias (hoisted)
            ],
            out_specs=pl.BlockSpec((tile_m, N_pad), lambda i: (i, 0)),
        ),
        compiler_params=pltpu.CompilerParams(
            dimension_semantics=("parallel",),
            # Within the default scoped limit on v5e/v6e and v7x's 64 MiB VMEM.
            vmem_limit_bytes=32 * 1024 * 1024,
        ),
    )(xp, wp, bp)

    return out[:M, :out_dim].reshape(*lead_shape, out_dim)


if __name__ == "__main__":
    # Small shapes consistent with the module: batch=2, seq=8, latent_dim=32, out_dim=16.
    B, T, LATENT, OUT = 2, 8, 32, 16

    key = jax.random.PRNGKey(0)
    kx, kw, kb = jax.random.split(key, 3)

    x = jax.random.normal(kx, (B, T, LATENT), dtype=jnp.float32)

    # zero_module() zero-initializes the Linear's weight and bias -> output is 0.
    weight = jnp.zeros((OUT, LATENT), dtype=jnp.float32)
    bias = jnp.zeros((OUT,), dtype=jnp.float32)

    y = jax.block_until_ready(final_layer_forward(x, weight, bias))
    assert y.shape == (B, T, OUT)
    assert y.dtype == x.dtype
    assert jnp.allclose(y, 0.0)

    # Non-trivial weights: check the bf16 fast path against a pure-JAX f32 reference.
    weight_nz = jax.random.normal(kw, (OUT, LATENT), dtype=jnp.float32) * 0.02
    bias_nz = jax.random.normal(kb, (OUT,), dtype=jnp.float32) * 0.02
    y_ref = x @ weight_nz.T + bias_nz

    y_bf16 = jax.block_until_ready(final_layer_forward(x, weight_nz, bias_nz))
    assert y_bf16.shape == (B, T, OUT)
    assert jnp.allclose(y_bf16, y_ref, atol=2e-2, rtol=2e-2)

    # Exact path (f32 compute) should match tightly.
    y_f32 = jax.block_until_ready(
        final_layer_forward(x, weight_nz, bias_nz, compute_dtype=jnp.float32))
    assert jnp.allclose(y_f32, y_ref, atol=1e-5, rtol=1e-5)

    # Ragged row count (M = 21, not a multiple of the tile) exercises padding.
    x_ragged = jax.random.normal(kx, (3, 7, LATENT), dtype=jnp.float32)
    y_ragged = jax.block_until_ready(
        final_layer_forward(x_ragged, weight_nz, bias_nz,
                            compute_dtype=jnp.float32))
    assert jnp.allclose(y_ragged, x_ragged @ weight_nz.T + bias_nz,
                        atol=1e-5, rtol=1e-5)

    print("KERNEL_OK")
</pallas_src>

<mosaic_0001>
module attributes {stable_mosaic.version = 11 : i64} {
  func.func @_linear_kernel(%arg0: i32, %arg1: memref<16x128xbf16, #tpu.memory_space<vmem>>, %arg2: memref<128x128xbf16, #tpu.memory_space<vmem>>, %arg3: memref<1x128xf32, #tpu.memory_space<vmem>>, %arg4: memref<16x128xf32, #tpu.memory_space<vmem>>) attributes {dimension_semantics = [#tpu.dimension_semantics<parallel>], iteration_bounds = array<i64: 1>, scalar_prefetch = 0 : i64, scratch_operands = 0 : i64, tpu.core_type = #tpu.core_type<tc>, window_params = [{transform_indices = @transform_0, window_bounds = array<i64: 16, 128>}, {pipeline_mode = #tpu.pipeline_mode<synchronous>, transform_indices = @transform_1, window_bounds = array<i64: 128, 128>}, {pipeline_mode = #tpu.pipeline_mode<synchronous>, transform_indices = @transform_2, window_bounds = array<i64: 1, 128>}, {transform_indices = @transform_3, window_bounds = array<i64: 16, 128>}]} {
    %c0 = arith.constant 0 : index
    %c0_0 = arith.constant 0 : index
    %0 = vector.load %arg1[%c0, %c0_0] : memref<16x128xbf16, #tpu.memory_space<vmem>>, vector<16x128xbf16>
    %c0_1 = arith.constant 0 : index
    %c0_2 = arith.constant 0 : index
    %1 = vector.load %arg2[%c0_1, %c0_2] : memref<128x128xbf16, #tpu.memory_space<vmem>>, vector<128x128xbf16>
    %cst = arith.constant dense<0.000000e+00> : vector<16x128xf32>
    %2 = tpu.matmul %0, %1, %cst {dimension_numbers = #tpu.dot_dimension_numbers<[1], [0], [0], [1], [0, 0, 1, 1], [], []>} : vector<16x128xbf16>, vector<128x128xbf16>, vector<16x128xf32> -> vector<16x128xf32>
    %c0_3 = arith.constant 0 : index
    %c0_4 = arith.constant 0 : index
    %3 = vector.load %arg3[%c0_3, %c0_4] : memref<1x128xf32, #tpu.memory_space<vmem>>, vector<1x128xf32>
    %4 = vector.broadcast %3 : vector<1x128xf32> to vector<16x128xf32>
    %5 = arith.addf %2, %4 : vector<16x128xf32>
    %c0_5 = arith.constant 0 : index
    %c0_6 = arith.constant 0 : index
    %6 = vector.load %arg4[%c0_5, %c0_6] : memref<16x128xf32, #tpu.memory_space<vmem>>, vector<16x128xf32>
    tpu.vector_store %arg4[%c0_5, %c0_6], %5 {strides = array<i32>} : memref<16x128xf32, #tpu.memory_space<vmem>>, vector<16x128xf32>,
    return
  }
  func.func @transform_0(%arg0: i32) -> (i32, i32) {
    %c0_i32 = arith.constant 0 : i32
    %c0_i32_0 = arith.constant 0 : i32
    return %arg0, %c0_i32 : i32, i32
  }
  func.func @transform_1(%arg0: i32) -> (i32, i32) {
    %c0_i32 = arith.constant 0 : i32
    %c0_i32_0 = arith.constant 0 : i32
    %c0_i32_1 = arith.constant 0 : i32
    return %c0_i32, %c0_i32_0 : i32, i32
  }
  func.func @transform_2(%arg0: i32) -> (i32, i32) {
    %c0_i32 = arith.constant 0 : i32
    %c0_i32_0 = arith.constant 0 : i32
    %c0_i32_1 = arith.constant 0 : i32
    return %c0_i32, %c0_i32_0 : i32, i32
  }
  func.func @transform_3(%arg0: i32) -> (i32, i32) {
    %c0_i32 = arith.constant 0 : i32
    %c0_i32_0 = arith.constant 0 : i32
    return %arg0, %c0_i32 : i32, i32
  }
}

</mosaic_0001>

<llo_original>
// kernel: tpu_custom_call.1
$region0: #{tpu_custom_call.1}
  #allocation0 [shape = 'u32[]', space=smem, size = 0x4, offset = 0x4, fixed_abs, tag = 'smem constant byte address 0x4 - core index']
  #allocation1 [shape = 'u32[144,128]{1,0:T(1,128)}', space=vmem, size = 0x12000, scoped, tag = 'internal scratch']
  %s0 = inlined_call_operand.hbm [shape: bf16[16,128], index: 0, kind: input, shape index: {}]
  %s1 = inlined_call_operand.hbm [shape: bf16[128,128], index: 1, kind: input, shape index: {}]
  %s2 = inlined_call_operand.vmem [shape: f32[1,128], index: 2, kind: input, shape index: {}]
  %s3 = inlined_call_operand.hbm [shape: f32[16,128], index: 3, kind: output, shape index: {}]
  %s4 = sld [smem:[#allocation0]]
  $region30: #{tpu_custom_call.1} parent=0
    _
  %s6 = ssub.s32 1, %s4
  %s7 = scalar_select 0, %s6, %s4
  $region1: #{tpu_custom_call.1} parent=0
    #allocation2 [shape = 'u8[4096]{0}', space=vmem, size = 0x1000, scoped, tag = 'input window, operand 0, single buffered']
    #allocation3 [shape = 's32[1]{0}', space=sflag, size = 0x4, scoped, tag = 'scoped memory for tpu_custom_call.1']
    #allocation4 [shape = 's32[1]{0}', space=sflag, size = 0x4, scoped, tag = 'scoped memory for tpu_custom_call.1']
    #allocation5 [shape = 'u8[32768]{0}', space=vmem, size = 0x8000, scoped, tag = 'input window, operand 1, single buffered']
    #allocation6 [shape = 's32[1]{0}', space=sflag, size = 0x4, scoped, tag = 'scoped memory for tpu_custom_call.1']
    #allocation7 [shape = 'u8[8192]{0}', space=vmem, size = 0x2000, scoped, tag = 'output window, operand 0, single buffered']
    %8 = vsyncpa [#allocation3], 0
    %9 = vsyncpa [#allocation6], 0
    %10 = vsyncpa [#allocation4], 0
    // Predicated region
    $region2: #{tpu_custom_call.1} parent=1 // pred_check
      _
    $region3: #{tpu_custom_call.1} parent=1 // pred_check_branch
      %12 = sbr.rel (0) target = $region5
    $region4: #{tpu_custom_call.1} parent=1 // pred_region
      %s14 = ssub.s32 128, 128
      %15 = vsyncadd [#allocation3], %s14
      %s16 = sshll.u32 [#allocation2], 4
      %s17 = int_to_ptr.vmem [resolvable:$true] %s16
      %22 = dma.hbm_to_vmem [thread:$0]  %s0, 128, %s17, [#allocation3], 64, 64, 4
    $region5: #{tpu_custom_call.1} parent=1 // pred_fallthru
      _
    // Predicated region
    $region6: #{tpu_custom_call.1} parent=1 // pred_check
      _
    $region7: #{tpu_custom_call.1} parent=1 // pred_check_branch
      %24 = sbr.rel (0) target = $region9
    $region8: #{tpu_custom_call.1} parent=1 // pred_region
      %s26 = ssub.s32 1024, 1024
      %27 = vsyncadd [#allocation6], %s26
      %s28 = sshll.u32 [#allocation5], 4
      %s29 = int_to_ptr.vmem [resolvable:$true] %s28
      %34 = dma.hbm_to_vmem [thread:$0]  %s1, 1024, %s29, [#allocation6], 64, 64, 4
    $region9: #{tpu_custom_call.1} parent=1 // pred_fallthru
      _
    // Predicated region
    $region10: #{tpu_custom_call.1} parent=1 // pred_check
      _
    $region11: #{tpu_custom_call.1} parent=1 // pred_check_branch
      %36 = sbr.rel (0) target = $region13
    $region12: #{tpu_custom_call.1} parent=1 // pred_region
      _
    $region13: #{tpu_custom_call.1} parent=1 // pred_fallthru
      _
    // Predicated region
    $region14: #{tpu_custom_call.1} parent=1 // pred_check
      _
    $region15: #{tpu_custom_call.1} parent=1 // pred_check_branch
      %38 = sbr.rel (0) target = $region17
    $region16: #{tpu_custom_call.1} parent=1 // pred_region
      %39 = dma.done [#allocation3], 128
    $region17: #{tpu_custom_call.1} parent=1 // pred_fallthru
      _
    // Predicated region
    $region18: #{tpu_custom_call.1} parent=1 // pred_check
      _
    $region19: #{tpu_custom_call.1} parent=1 // pred_check_branch
      %41 = sbr.rel (0) target = $region21
    $region20: #{tpu_custom_call.1} parent=1 // pred_region
      %42 = dma.done [#allocation6], 1024
    $region21: #{tpu_custom_call.1} parent=1 // pred_fallthru
      _
    %v44 = vld [vmem:[#allocation2] sm:$0xf]
    %v45 = vld [vmem:[#allocation2 + $0x4] sm:$0xf]
    %v46 = vld [vmem:[#allocation5] sm:$0xf]
    %v47 = vld [vmem:[#allocation5 + $0x4] sm:$0xf]
    %v48 = vld [vmem:[#allocation5 + $0x8] sm:$0xf]
    %v49 = vld [vmem:[#allocation5 + $0xc] sm:$0xf]
    %v50 = vld [vmem:[#allocation5 + $0x10] sm:$0xf]
    %v51 = vld [vmem:[#allocation5 + $0x14] sm:$0xf]
    %v52 = vld [vmem:[#allocation5 + $0x18] sm:$0xf]
    %v53 = vld [vmem:[#allocation5 + $0x1c] sm:$0xf]
    %v54 = vld [vmem:[#allocation5 + $0x20] sm:$0xf]
    %v55 = vld [vmem:[#allocation5 + $0x24] sm:$0xf]
    %v56 = vld [vmem:[#allocation5 + $0x28] sm:$0xf]
    %v57 = vld [vmem:[#allocation5 + $0x2c] sm:$0xf]
    %v58 = vld [vmem:[#allocation5 + $0x30] sm:$0xf]
    %v59 = vld [vmem:[#allocation5 + $0x34] sm:$0xf]
    %v60 = vld [vmem:[#allocation5 + $0x38] sm:$0xf]
    %v61 = vld [vmem:[#allocation5 + $0x3c] sm:$0xf]
    %v62 = vld [vmem:[%s2] sm:$0x1]
    %v64 = vlaneseq
    %v65 = vshrl.u32 %v64, 7
    %v66 = vsub.s32 0, %v65
    %v67 = vrot.slane %v62, %v66
    %v71 = vunpack.c.l.b16 %v44
    %v72 = vunpack.c.l.b16 %v45
    %v73 = vpack.c.b16 %v72, %v71
    %v91 = vunpack.c.l.b16 %v46
    %v92 = vunpack.c.l.b16 %v47
    %v93 = vunpack.c.l.b16 %v48
    %v94 = vunpack.c.l.b16 %v49
    %v95 = vunpack.c.l.b16 %v50
    %v96 = vunpack.c.l.b16 %v51
    %v97 = vunpack.c.l.b16 %v52
    %v98 = vunpack.c.l.b16 %v53
    %v99 = vunpack.c.l.b16 %v54
    %v100 = vunpack.c.l.b16 %v55
    %v101 = vunpack.c.l.b16 %v56
    %v102 = vunpack.c.l.b16 %v57
    %v103 = vunpack.c.l.b16 %v58
    %v104 = vunpack.c.l.b16 %v59
    %v105 = vunpack.c.l.b16 %v60
    %v106 = vunpack.c.l.b16 %v61
    %v107 = vpack.c.b16 %v92, %v91
    %v108 = vpack.c.b16 %v94, %v93
    %v109 = vpack.c.b16 %v96, %v95
    %v110 = vpack.c.b16 %v98, %v97
    %v111 = vpack.c.b16 %v100, %v99
    %v112 = vpack.c.b16 %v102, %v101
    %v113 = vpack.c.b16 %v104, %v103
    %v114 = vpack.c.b16 %v106, %v105
    %123 = vmatprep.subr.bf16.mxu0 0
    %124 = vmatpush1.bf16.msra.mxu0 %v107
    %125 = vmatprep.subr.bf16.mxu0 0
    %126 = vmatpush1.bf16.msra.mxu0 %v108
    %127 = vmatprep.subr.bf16.mxu0 0
    %128 = vmatpush1.bf16.msra.mxu0 %v109
    %129 = vmatprep.subr.bf16.mxu0 0
    %130 = vmatpush1.bf16.msra.mxu0 %v110
    %131 = vmatprep.subr.bf16.mxu0 0
    %132 = vmatpush1.bf16.msra.mxu0 %v111
    %133 = vmatprep.subr.bf16.mxu0 0
    %134 = vmatpush1.bf16.msra.mxu0 %v112
    %135 = vmatprep.subr.bf16.mxu0 0
    %136 = vmatpush1.bf16.msra.mxu0 %v113
    %137 = vmatprep.subr.bf16.mxu0 0
    %138 = vmatpush1.bf16.msra.mxu0 %v114
    %139 = vmatprep.subr.bf16.mxu0 0
    %140 = vmatpush1.bf16.msra.mxu0 0
    %141 = vmatprep.subr.bf16.mxu0 0
    %142 = vmatpush1.bf16.msra.mxu0 0
    %143 = vmatprep.subr.bf16.mxu0 0
    %144 = vmatpush1.bf16.msra.mxu0 0
    %145 = vmatprep.subr.bf16.mxu0 0
    %146 = vmatpush1.bf16.msra.mxu0 0
    %147 = vmatprep.subr.bf16.mxu0 0
    %148 = vmatpush1.bf16.msra.mxu0 0
    %149 = vmatprep.subr.bf16.mxu0 0
    %150 = vmatpush1.bf16.msra.mxu0 0
    %151 = vmatprep.subr.bf16.mxu0 0
    %152 = vmatpush1.bf16.msra.mxu0 0
    %153 = vmatprep.subr.bf16.mxu0 0
    %154 = vmatpush1.bf16.msra.mxu0 0
    %155 = vmatprep.mubr.bf16.mxu0 0
    %156 = vmatmul.mubr.bf16.gmra.mrb[0].mxu0 %v73
    %v157 = vpop.f32.mrb[0].mxu0
    %v158 = vadd.f32 %v67, %v157
    %v159 = vpop.f32.mrb[0].mxu0
    %v160 = vpop.f32.mrb[0].mxu0
    %v161 = vadd.f32 %v67, %v160
    %v162 = vpop.f32.mrb[0].mxu0
    %163 = vdwg.mxu0
    %164 = vst [vmem:[#allocation7] sm:$0xff] %v158
    %165 = vst [vmem:[#allocation7 + $0x8] sm:$0xff] %v161
    // Predicated region
    $region22: #{tpu_custom_call.1} parent=1 // pred_check
      _
    $region23: #{tpu_custom_call.1} parent=1 // pred_check_branch
      %167 = sbr.rel (0) target = $region25
    $region24: #{tpu_custom_call.1} parent=1 // pred_region
      %s169 = ssub.s32 256, 256
      %170 = vsyncadd [#allocation4], %s169
      %s171 = sshll.u32 [#allocation7], 4
      %s172 = int_to_ptr.vmem [resolvable:$true] %s171
      %177 = dma.vmem_to_hbm [thread:$0]  %s172, 256, %s3, [#allocation4], 128, 128, 8
    $region25: #{tpu_custom_call.1} parent=1 // pred_fallthru
      _
    // Predicated region
    $region26: #{tpu_custom_call.1} parent=1 // pred_check
      _
    $region27: #{tpu_custom_call.1} parent=1 // pred_check_branch
      %179 = sbr.rel (0) target = $region29
    $region28: #{tpu_custom_call.1} parent=1 // pred_region
      %180 = dma.done [#allocation4], 256
    $region29: #{tpu_custom_call.1} parent=1 // pred_fallthru
      _
    %181 = vsyncpa [#allocation3], 1
    %182 = vsyncpa [#allocation6], 1
    %183 = vsyncpa [#allocation4], 1

</llo_original>
